<compile_context>
chip_gen: v5e
topology: v5e:2x2
jax: 0.10.0
libtpu: 0.0.40
codegen_flags: <defaults>
</compile_context>

<pallas_src>
import functools

import jax
import jax.numpy as jnp
from jax import lax
from jax.experimental import pallas as pl
from jax.experimental.pallas import tpu as pltpu

LANES = 128          # vreg lane width
SUBLANES = 8         # f32 vreg sublane height
MAX_BLK_ROWS = 4096  # 4096*128*4B = 2 MiB f32 tile


def _cdiv(a, b):
    return -(-a // b)


def _round_up(a, b):
    return _cdiv(a, b) * b


@functools.lru_cache(maxsize=None)
def _num_tensorcores():
    """2 on v7x (dual TensorCore per chip), else 1 (v5e / v6e)."""
    try:
        kind = jax.devices()[0].device_kind.lower()
    except Exception:
        return 1
    return 2 if "v7" in kind else 1


def _focal_elementwise(x, t, *, alpha, gamma, logits, binary_targets):
    """Per-element focal loss; x, t already f32."""
    if logits:
        if binary_targets:
            # 2 EUP transcendentals (exp, log1p) + approx reciprocal instead
            # of 3. Exact for t in {0,1}; assumes |logits| within f32 exp range.
            z = x * (2.0 * t - 1.0)
            e = jnp.exp(-z)
            bce = jnp.log1p(e)
            pt = pl.reciprocal(1.0 + e, approx=True)
        else:
            # binary_cross_entropy_with_logits, reduction='none'
            bce = jnp.maximum(x, 0.0) - x * t + jnp.log1p(jnp.exp(-jnp.abs(x)))
            pt = jnp.exp(-bce)
    else:
        if binary_targets:
            # 1 EUP transcendental instead of 3; exact for t in {0,1}.
            pt = jnp.where(t >= 0.5, x, 1.0 - x)
            bce = -jnp.maximum(jnp.log(pt), -100.0)
        else:
            # binary_cross_entropy, reduction='none'; PyTorch clamps log at -100.
            log_p = jnp.maximum(jnp.log(x), -100.0)
            log_1mp = jnp.maximum(jnp.log(1.0 - x), -100.0)
            bce = -(t * log_p + (1.0 - t) * log_1mp)
            pt = jnp.exp(-bce)

    q = 1.0 - pt

    g = float(gamma)
    if g == 0.0:
        w = jnp.ones_like(q)
    elif g == round(g) and 1 <= int(round(g)) <= 16:
        # Integer gamma (default 4): exponentiation-by-squaring multiply chain
        # on the VPU instead of exp(g*log(q)) on the single EUP slot.
        e_int = int(round(g))
        w, base = None, q
        while e_int > 0:
            if e_int & 1:
                w = base if w is None else w * base
            e_int >>= 1
            if e_int:
                base = base * base
    else:
        w = q ** g  # non-integer gamma fallback

    return alpha * w * bce


def _tail_mask(blk_rows, grid_inner, n_valid):
    """Per-element validity mask of the current block (global index < n)."""
    blk = pl.program_id(0) * grid_inner + pl.program_id(1)
    start = blk * (blk_rows * LANES)  # n < 2**31 assumed (int32 arithmetic)
    eidx = (start
            + lax.broadcasted_iota(jnp.int32, (blk_rows, LANES), 0) * LANES
            + lax.broadcasted_iota(jnp.int32, (blk_rows, LANES), 1))
    return eidx < n_valid


def _focal_sum_kernel(x_ref, t_ref, o_ref, acc_ref, *, alpha, gamma, logits,
                      binary_targets, grid_inner, n_valid, mask_tail,
                      pad_x, pad_t):
    i = pl.program_id(1)

    @pl.when(i == 0)
    def _():
        acc_ref[...] = jnp.zeros_like(acc_ref)

    x = x_ref[...].astype(jnp.float32)
    t = t_ref[...].astype(jnp.float32)

    if mask_tail:
        valid = _tail_mask(x.shape[0], grid_inner, n_valid)
        # Substitute BEFORE the logs so OOB garbage can never produce NaNs ...
        x = jnp.where(valid, x, pad_x)
        t = jnp.where(valid, t, pad_t)

    f_loss = _focal_elementwise(x, t, alpha=alpha, gamma=gamma, logits=logits,
                                binary_targets=binary_targets)
    if mask_tail:
        # ... and force the padded contribution to exactly zero.
        f_loss = jnp.where(valid, f_loss, 0.0)

    # Lane-dense vector accumulation (pure VPU adds); no per-step XLU reduce.
    acc_ref[...] += f_loss.reshape(-1, SUBLANES, LANES).sum(axis=0)

    @pl.when(i == pl.num_programs(1) - 1)
    def _():
        o_ref[...] = acc_ref[...]


def _focal_map_kernel(x_ref, t_ref, o_ref, *, alpha, gamma, logits,
                      binary_targets, grid_inner, n_valid, mask_tail,
                      pad_x, pad_t):
    x = x_ref[...].astype(jnp.float32)
    t = t_ref[...].astype(jnp.float32)
    if mask_tail:
        valid = _tail_mask(x.shape[0], grid_inner, n_valid)
        x = jnp.where(valid, x, pad_x)
        t = jnp.where(valid, t, pad_t)
    f = _focal_elementwise(x, t, alpha=alpha, gamma=gamma, logits=logits,
                           binary_targets=binary_targets)
    o_ref[...] = f.astype(o_ref.dtype)


def _tiling(rows, nsplits, gran):
    """Pick (nsplits, grid_inner, blk_rows).

    Blocks are multiples of `gran` rows, at most MAX_BLK_ROWS, and no grid
    block lies entirely past the end of the array (only the last block may be
    partial / out of bounds).
    """
    max_blk_groups = max(1, MAX_BLK_ROWS // gran)
    groups = _cdiv(rows, gran)
    if groups < nsplits:
        nsplits = 1

    def plan(ns):
        gps = _cdiv(groups, ns)            # row-groups per split
        gi = _cdiv(gps, max_blk_groups)    # blocks per split
        bg = _cdiv(gps, gi)                # row-groups per block
        return ns, gi, bg

    nsplits, grid_inner, blk_groups = plan(nsplits)
    if (nsplits * grid_inner - 1) * blk_groups >= groups:
        # Would create a block entirely out of bounds -> fall back to 1 split.
        nsplits, grid_inner, blk_groups = plan(1)
    return nsplits, grid_inner, blk_groups * gran


def binary_focal_loss(inputs, targets, *, alpha=0.5, gamma=4.0, logits=False,
                      reduce=True, assume_binary_targets=False):
    """Pallas TPU implementation of BinaryFocalLoss.forward."""
    assert inputs.shape == targets.shape
    n = int(inputs.size)
    assert n > 0
    dtype = inputs.dtype
    itemsize = jnp.dtype(dtype).itemsize
    # Sublane granularity by dtype: 8 (f32), 16 (bf16/f16), 32 (8-bit).
    gran = SUBLANES * max(1, 4 // max(1, itemsize))

    # Padding values never produce NaN through the logs (and give ~zero loss);
    # exact zeroing of padded elements is enforced by the in-kernel mask, so
    # correctness does not rely on pad-value arithmetic.
    pad_x = 100.0 if logits else 1.0
    pad_t = 1.0

    # Lane-dense [rows, 128] slab. Copy ONLY when n isn't 128-aligned, and then
    # only pad to the next multiple of 128 (never to the grid extent).
    x_flat = inputs.reshape(-1)
    t_flat = targets.reshape(-1)
    n128 = _round_up(n, LANES)
    if n128 != n:
        x_flat = jnp.concatenate(
            [x_flat, jnp.full((n128 - n,), pad_x, dtype)])
        t_flat = jnp.concatenate(
            [t_flat, jnp.full((n128 - n,), pad_t, targets.dtype)])
    rows = n128 // LANES
    x2 = x_flat.reshape(rows, LANES)
    t2 = t_flat.reshape(rows, LANES)

    nsplits, grid_inner, blk_rows = _tiling(rows, _num_tensorcores(), gran)
    coverage = nsplits * grid_inner * blk_rows * LANES
    mask_tail = coverage != n   # any padded / out-of-bounds element in the grid

    kw = dict(alpha=float(alpha), gamma=float(gamma), logits=bool(logits),
              binary_targets=bool(assume_binary_targets),
              grid_inner=grid_inner, n_valid=n, mask_tail=mask_tail,
              pad_x=pad_x, pad_t=pad_t)

    in_specs = [
        pl.BlockSpec((blk_rows, LANES),
                     lambda c, i, G=grid_inner: (c * G + i, 0)),
        pl.BlockSpec((blk_rows, LANES),
                     lambda c, i, G=grid_inner: (c * G + i, 0)),
    ]

    # Only CORE_PARALLEL actually fans the split axis out across v7x's two
    # TensorCores; single-TC chips use one split and a plain sequential axis.
    split_sem = (getattr(pltpu, "CORE_PARALLEL", "parallel")
                 if nsplits > 1 else "arbitrary")

    in_tile = blk_rows * LANES * itemsize

    if reduce:
        vmem_limit = int(min(40 << 20,
                             max(16 << 20, 2 * 2 * in_tile + (8 << 20))))
        partials = pl.pallas_call(
            functools.partial(_focal_sum_kernel, **kw),
            out_shape=jax.ShapeDtypeStruct((nsplits * SUBLANES, LANES),
                                           jnp.float32),
            grid_spec=pltpu.PrefetchScalarGridSpec(
                num_scalar_prefetch=0,
                grid=(nsplits, grid_inner),
                in_specs=in_specs,
                out_specs=pl.BlockSpec((SUBLANES, LANES),
                                       lambda c, i: (c, 0)),
                scratch_shapes=[pltpu.VMEM((SUBLANES, LANES), jnp.float32)],
            ),
            compiler_params=pltpu.CompilerParams(
                dimension_semantics=(split_sem, "arbitrary"),
                vmem_limit_bytes=vmem_limit),
        )(x2, t2)
        # Tiny final cross-lane reduce + mean on a (nsplits*8, 128) array.
        return jnp.sum(partials) / jnp.float32(n)

    # reduce=False: pure elementwise map in the *input* dtype.
    out_dtype = dtype
    out_tile = blk_rows * LANES * jnp.dtype(out_dtype).itemsize
    vmem_limit = int(min(40 << 20,
                         max(16 << 20, 2 * (2 * in_tile + out_tile) + (8 << 20))))
    out = pl.pallas_call(
        functools.partial(_focal_map_kernel, **kw),
        out_shape=jax.ShapeDtypeStruct((rows, LANES), out_dtype),
        grid_spec=pltpu.PrefetchScalarGridSpec(
            num_scalar_prefetch=0,
            grid=(nsplits, grid_inner),
            in_specs=in_specs,
            out_specs=pl.BlockSpec((blk_rows, LANES),
                                   lambda c, i, G=grid_inner: (c * G + i, 0)),
        ),
        compiler_params=pltpu.CompilerParams(
            dimension_semantics=(split_sem, "arbitrary"),
            vmem_limit_bytes=vmem_limit),
    )(x2, t2)
    if n128 == n:
        return out.reshape(inputs.shape)           # free reshape, no copy
    return out.reshape(-1)[:n].reshape(inputs.shape)


def _reference(inputs, targets, alpha=0.5, gamma=4.0, logits=False,
               reduce=True):
    x = inputs.astype(jnp.float32)
    t = targets.astype(jnp.float32)
    if logits:
        bce = jnp.maximum(x, 0.0) - x * t + jnp.log1p(jnp.exp(-jnp.abs(x)))
    else:
        log_p = jnp.maximum(jnp.log(x), -100.0)
        log_1mp = jnp.maximum(jnp.log(1.0 - x), -100.0)
        bce = -(t * log_p + (1.0 - t) * log_1mp)
    pt = jnp.exp(-bce)
    f = alpha * (1.0 - pt) ** gamma * bce
    return jnp.mean(f) if reduce else f


if __name__ == "__main__":
    key = jax.random.PRNGKey(0)
    k1, k2, k3, k4, k5 = jax.random.split(key, 5)

    # Default module config: probabilities in (logits=False), mean out.
    x = jax.random.uniform(k1, (2, 4, 16, 16), jnp.float32,
                           minval=0.01, maxval=0.99)
    t = (jax.random.uniform(k2, (2, 4, 16, 16), jnp.float32) > 0.5
         ).astype(jnp.float32)

    loss = jax.block_until_ready(
        binary_focal_loss(x, t, alpha=0.5, gamma=4.0, logits=False,
                          reduce=True))
    ref = _reference(x, t, alpha=0.5, gamma=4.0)
    assert jnp.allclose(loss, ref, rtol=1e-5, atol=1e-6), (loss, ref)

    # Ragged size: exercises the in-kernel tail mask (no grid-extent padding).
    x_odd = jax.random.uniform(k3, (2, 3, 15, 17), jnp.float32,
                               minval=0.01, maxval=0.99)
    t_odd = (jax.random.uniform(k4, (2, 3, 15, 17), jnp.float32) > 0.5
             ).astype(jnp.float32)
    loss_odd = jax.block_until_ready(binary_focal_loss(x_odd, t_odd))
    ref_odd = _reference(x_odd, t_odd)
    assert jnp.allclose(loss_odd, ref_odd, rtol=1e-5, atol=1e-6), (
        loss_odd, ref_odd)

    # Elementwise (reduce=False), 128-aligned: input dtype out, no unpad copy.
    f = jax.block_until_ready(binary_focal_loss(x, t, reduce=False))
    f_ref = _reference(x, t, reduce=False)
    assert f.dtype == x.dtype
    assert jnp.allclose(f, f_ref, rtol=1e-5, atol=1e-6), "reduce=False mismatch"

    # Elementwise on the ragged shape (partial last block + wrapper unpad).
    f_odd = jax.block_until_ready(binary_focal_loss(x_odd, t_odd, reduce=False))
    f_odd_ref = _reference(x_odd, t_odd, reduce=False)
    assert jnp.allclose(f_odd, f_odd_ref, rtol=1e-5, atol=1e-6), \
        "ragged reduce=False mismatch"

    # logits=True path (ragged -> also exercises the logits padding/mask).
    z = jax.random.normal(k5, (2, 3, 15, 17), jnp.float32) * 2.0
    loss_lg = jax.block_until_ready(binary_focal_loss(z, t_odd, logits=True))
    ref_lg = _reference(z, t_odd, logits=True)
    assert jnp.allclose(loss_lg, ref_lg, rtol=1e-5, atol=1e-6), (loss_lg, ref_lg)

    # Opt-in binary-target EUP fast paths (exact for t in {0,1}).
    loss_fast = jax.block_until_ready(
        binary_focal_loss(x, t, assume_binary_targets=True))
    assert jnp.allclose(loss_fast, ref, rtol=1e-4, atol=1e-6), (loss_fast, ref)
    # logits fast path uses an approximate reciprocal -> loose tolerance
    # (coverage / compile check more than an accuracy check).
    loss_lg_fast = jax.block_until_ready(
        binary_focal_loss(z, t_odd, logits=True, assume_binary_targets=True))
    assert jnp.allclose(loss_lg_fast, ref_lg, rtol=5e-2, atol=1e-4), (
        loss_lg_fast, ref_lg)

    print("KERNEL_OK")
</pallas_src>

<mosaic_0001>
module attributes {stable_mosaic.version = 11 : i64} {
  func.func @_focal_sum_kernel(%arg0: i32, %arg1: i32, %arg2: memref<16x128xf32, #tpu.memory_space<vmem>>, %arg3: memref<16x128xf32, #tpu.memory_space<vmem>>, %arg4: memref<8x128xf32, #tpu.memory_space<vmem>>, %arg5: memref<8x128xf32, #tpu.memory_space<vmem>>) attributes {dimension_semantics = [#tpu.dimension_semantics<arbitrary>, #tpu.dimension_semantics<arbitrary>], iteration_bounds = array<i64: 1, 1>, scalar_prefetch = 0 : i64, scratch_operands = 1 : i64, tpu.core_type = #tpu.core_type<tc>, window_params = [{transform_indices = @transform_0, window_bounds = array<i64: 16, 128>}, {transform_indices = @transform_1, window_bounds = array<i64: 16, 128>}, {transform_indices = @transform_2, window_bounds = array<i64: 8, 128>}]} {
    %c0_i32 = arith.constant 0 : i32
    %0 = arith.cmpi eq, %arg1, %c0_i32 : i32
    %1 = arith.extui %0 : i1 to i32
    %c0_i32_0 = arith.constant 0 : i32
    %2 = arith.cmpi ne, %1, %c0_i32_0 : i32
    scf.if %2 {
      %cst_18 = arith.constant 0.000000e+00 : f32
      %38 = vector.broadcast %cst_18 : f32 to vector<8x128xf32>
      %c0_19 = arith.constant 0 : index
      %c0_20 = arith.constant 0 : index
      %39 = vector.load %arg5[%c0_19, %c0_20] : memref<8x128xf32, #tpu.memory_space<vmem>>, vector<8x128xf32>
      tpu.vector_store %arg5[%c0_19, %c0_20], %38 {strides = array<i32>} : memref<8x128xf32, #tpu.memory_space<vmem>>, vector<8x128xf32>,
    } else {
    }
    %c0 = arith.constant 0 : index
    %c0_1 = arith.constant 0 : index
    %3 = vector.load %arg2[%c0, %c0_1] : memref<16x128xf32, #tpu.memory_space<vmem>>, vector<16x128xf32>
    %c0_2 = arith.constant 0 : index
    %c0_3 = arith.constant 0 : index
    %4 = vector.load %arg3[%c0_2, %c0_3] : memref<16x128xf32, #tpu.memory_space<vmem>>, vector<16x128xf32>
    %5 = math.log %3 : vector<16x128xf32>
    %cst = arith.constant -1.000000e+02 : f32
    %6 = vector.broadcast %cst : f32 to vector<16x128xf32>
    %7 = arith.maximumf %5, %6 : vector<16x128xf32>
    %cst_4 = arith.constant 1.000000e+00 : f32
    %8 = vector.broadcast %cst_4 : f32 to vector<16x128xf32>
    %9 = arith.subf %8, %3 : vector<16x128xf32>
    %10 = math.log %9 : vector<16x128xf32>
    %cst_5 = arith.constant -1.000000e+02 : f32
    %11 = vector.broadcast %cst_5 : f32 to vector<16x128xf32>
    %12 = arith.maximumf %10, %11 : vector<16x128xf32>
    %13 = arith.mulf %4, %7 : vector<16x128xf32>
    %cst_6 = arith.constant 1.000000e+00 : f32
    %14 = vector.broadcast %cst_6 : f32 to vector<16x128xf32>
    %15 = arith.subf %14, %4 : vector<16x128xf32>
    %16 = arith.mulf %15, %12 : vector<16x128xf32>
    %17 = arith.addf %13, %16 : vector<16x128xf32>
    %cst_7 = arith.constant 0.000000e+00 : f32
    %18 = vector.broadcast %cst_7 : f32 to vector<16x128xf32>
    %19 = arith.subf %18, %17 : vector<16x128xf32>
    %cst_8 = arith.constant 0.000000e+00 : f32
    %20 = vector.broadcast %cst_8 : f32 to vector<16x128xf32>
    %21 = arith.subf %20, %19 : vector<16x128xf32>
    %22 = math.exp %21 : vector<16x128xf32>
    %cst_9 = arith.constant 1.000000e+00 : f32
    %23 = vector.broadcast %cst_9 : f32 to vector<16x128xf32>
    %24 = arith.subf %23, %22 : vector<16x128xf32>
    %25 = arith.mulf %24, %24 : vector<16x128xf32>
    %26 = arith.mulf %25, %25 : vector<16x128xf32>
    %cst_10 = arith.constant 5.000000e-01 : f32
    %27 = vector.broadcast %cst_10 : f32 to vector<16x128xf32>
    %28 = arith.mulf %27, %26 : vector<16x128xf32>
    %29 = arith.mulf %28, %19 : vector<16x128xf32>
    %c0_11 = arith.constant 0 : index
    %c0_12 = arith.constant 0 : index
    %30 = vector.load %arg5[%c0_11, %c0_12] : memref<8x128xf32, #tpu.memory_space<vmem>>, vector<8x128xf32>
    %31 = vector.shape_cast %29 : vector<16x128xf32> to vector<2x8x128xf32>
    %cst_13 = arith.constant dense<0.000000e+00> : vector<8x128xf32>
    %32 = vector.multi_reduction <add>, %31, %cst_13 [0] : vector<2x8x128xf32> to vector<8x128xf32>
    %33 = arith.addf %30, %32 : vector<8x128xf32>
    %c0_14 = arith.constant 0 : index
    %c0_15 = arith.constant 0 : index
    %34 = vector.load %arg5[%c0_14, %c0_15] : memref<8x128xf32, #tpu.memory_space<vmem>>, vector<8x128xf32>
    tpu.vector_store %arg5[%c0_14, %c0_15], %33 {strides = array<i32>} : memref<8x128xf32, #tpu.memory_space<vmem>>, vector<8x128xf32>,
    %c0_i32_16 = arith.constant 0 : i32
    %35 = arith.cmpi eq, %arg1, %c0_i32_16 : i32
    %36 = arith.extui %35 : i1 to i32
    %c0_i32_17 = arith.constant 0 : i32
    %37 = arith.cmpi ne, %36, %c0_i32_17 : i32
    scf.if %37 {
      %c0_18 = arith.constant 0 : index
      %c0_19 = arith.constant 0 : index
      %38 = vector.load %arg5[%c0_18, %c0_19] : memref<8x128xf32, #tpu.memory_space<vmem>>, vector<8x128xf32>
      %c0_20 = arith.constant 0 : index
      %c0_21 = arith.constant 0 : index
      %39 = vector.load %arg4[%c0_20, %c0_21] : memref<8x128xf32, #tpu.memory_space<vmem>>, vector<8x128xf32>
      tpu.vector_store %arg4[%c0_20, %c0_21], %38 {strides = array<i32>} : memref<8x128xf32, #tpu.memory_space<vmem>>, vector<8x128xf32>,
    } else {
    }
    return
  }
  func.func @transform_0(%arg0: i32, %arg1: i32) -> (i32, i32) {
    %c1_i32 = arith.constant 1 : i32
    %0 = arith.muli %arg0, %c1_i32 : i32
    %1 = arith.addi %0, %arg1 : i32
    %c0_i32 = arith.constant 0 : i32
    %c0_i32_0 = arith.constant 0 : i32
    return %1, %c0_i32 : i32, i32
  }
  func.func @transform_1(%arg0: i32, %arg1: i32) -> (i32, i32) {
    %c1_i32 = arith.constant 1 : i32
    %0 = arith.muli %arg0, %c1_i32 : i32
    %1 = arith.addi %0, %arg1 : i32
    %c0_i32 = arith.constant 0 : i32
    %c0_i32_0 = arith.constant 0 : i32
    return %1, %c0_i32 : i32, i32
  }
  func.func @transform_2(%arg0: i32, %arg1: i32) -> (i32, i32) {
    %c0_i32 = arith.constant 0 : i32
    %c0_i32_0 = arith.constant 0 : i32
    return %arg0, %c0_i32 : i32, i32
  }
}

</mosaic_0001>

<llo_original>
// kernel: tpu_custom_call.1
$region0: #{tpu_custom_call.1}
  #allocation0 [shape = 'u32[]', space=smem, size = 0x4, offset = 0x4, fixed_abs, tag = 'smem constant byte address 0x4 - core index']
  #allocation1 [shape = 'u32[72,128]{1,0:T(1,128)}', space=vmem, size = 0x9000, scoped, tag = 'internal scratch']
  #allocation2 [shape = 'f32[8,128]{1,0:T(8,128)}', space=vmem, size = 0x1000, scoped, tag = 'scratch operand']
  %s0 = inlined_call_operand.hbm [shape: f32[16,128], index: 0, kind: input, shape index: {}]
  %s1 = inlined_call_operand.hbm [shape: f32[16,128], index: 1, kind: input, shape index: {}]
  %s2 = inlined_call_operand.hbm [shape: f32[8,128], index: 2, kind: output, shape index: {}]
  %s3 = sld [smem:[#allocation0]]
  $region34: #{tpu_custom_call.1} parent=0
    _
  %s5 = ssub.s32 1, %s3
  %s6 = scalar_select 0, %s5, %s3
  $region1: #{tpu_custom_call.1} parent=0
    #allocation3 [shape = 'u8[8192]{0}', space=vmem, size = 0x2000, scoped, tag = 'input window, operand 0, single buffered']
    #allocation4 [shape = 's32[1]{0}', space=sflag, size = 0x4, scoped, tag = 'scoped memory for tpu_custom_call.1']
    #allocation5 [shape = 's32[1]{0}', space=sflag, size = 0x4, scoped, tag = 'scoped memory for tpu_custom_call.1']
    #allocation6 [shape = 'u8[8192]{0}', space=vmem, size = 0x2000, scoped, tag = 'input window, operand 1, single buffered']
    #allocation7 [shape = 's32[1]{0}', space=sflag, size = 0x4, scoped, tag = 'scoped memory for tpu_custom_call.1']
    #allocation8 [shape = 'u8[4096]{0}', space=vmem, size = 0x1000, scoped, tag = 'output window, operand 0, single buffered']
    %7 = vsyncpa [#allocation4], 0
    %8 = vsyncpa [#allocation7], 0
    %9 = vsyncpa [#allocation5], 0
    // Predicated region
    $region2: #{tpu_custom_call.1} parent=1 // pred_check
      _
    $region3: #{tpu_custom_call.1} parent=1 // pred_check_branch
      %11 = sbr.rel (0) target = $region5
    $region4: #{tpu_custom_call.1} parent=1 // pred_region
      %s12 = sadd.s32 0, 0
      %s13 = smul.u32 2, %s12
      %15 = vsyncadd [#allocation4], 0
      %s16 = smul.addr %s13, 8
      %s17 = scalar_lea.hbm %s0, %s16
      %s18 = sshll.u32 %s17, 4
      %s19 = int_to_ptr.hbm [resolvable:$true] %s18
      %s20 = sshll.u32 [#allocation3], 4
      %s21 = int_to_ptr.vmem [resolvable:$true] %s20
      %26 = dma.hbm_to_vmem [thread:$0]  %s19, 256, %s21, [#allocation4], 128, 128, 8
    $region5: #{tpu_custom_call.1} parent=1 // pred_fallthru
      _
    // Predicated region
    $region6: #{tpu_custom_call.1} parent=1 // pred_check
      _
    $region7: #{tpu_custom_call.1} parent=1 // pred_check_branch
      %28 = sbr.rel (0) target = $region9
    $region8: #{tpu_custom_call.1} parent=1 // pred_region
      %s29 = sadd.s32 0, 0
      %s30 = smul.u32 2, %s29
      %32 = vsyncadd [#allocation7], 0
      %s33 = smul.addr %s30, 8
      %s34 = scalar_lea.hbm %s1, %s33
      %s35 = sshll.u32 %s34, 4
      %s36 = int_to_ptr.hbm [resolvable:$true] %s35
      %s37 = sshll.u32 [#allocation6], 4
      %s38 = int_to_ptr.vmem [resolvable:$true] %s37
      %43 = dma.hbm_to_vmem [thread:$0]  %s36, 256, %s38, [#allocation7], 128, 128, 8
    $region9: #{tpu_custom_call.1} parent=1 // pred_fallthru
      _
    // Predicated region
    $region10: #{tpu_custom_call.1} parent=1 // pred_check
      _
    $region11: #{tpu_custom_call.1} parent=1 // pred_check_branch
      %45 = sbr.rel (0) target = $region13
    $region12: #{tpu_custom_call.1} parent=1 // pred_region
      %47 = dma.done [#allocation4], 256
    $region13: #{tpu_custom_call.1} parent=1 // pred_fallthru
      _
    // Predicated region
    $region14: #{tpu_custom_call.1} parent=1 // pred_check
      _
    $region15: #{tpu_custom_call.1} parent=1 // pred_check_branch
      %49 = sbr.rel (0) target = $region17
    $region16: #{tpu_custom_call.1} parent=1 // pred_region
      %51 = dma.done [#allocation7], 256
    $region17: #{tpu_custom_call.1} parent=1 // pred_fallthru
      _
    %s52 = sadd.s32 0, 0
    %s53 = smul.u32 2, %s52
    %s54 = sadd.s32 0, 0
    %s55 = smul.u32 2, %s54
    %p56 = scmp.eq.s32.totalorder 0, 0
    // Predicated region
    $region18: #{tpu_custom_call.1} parent=1 // pred_check
      %p57 = pneg %p56
    $region19: #{tpu_custom_call.1} parent=1 // pred_check_branch
      %59 = sbr.rel (%p57) target = $region21
    $region20: #{tpu_custom_call.1} parent=1 // pred_region
      %60 = vst [vmem:[#allocation2] sm:$0xff] 0.0
    $region21: #{tpu_custom_call.1} parent=1 // pred_fallthru
      _
    %v61 = vld [vmem:[#allocation3] sm:$0xff]
    %v62 = vld [vmem:[#allocation3 + $0x8] sm:$0xff]
    %v63 = vld [vmem:[#allocation6] sm:$0xff]
    %v64 = vld [vmem:[#allocation6 + $0x8] sm:$0xff]
    %v65 = vlog2.pop %v61
    %v66 = vmul.f32 %v65, 0.6931472
    %v67 = vlog2.pop %v62
    %v68 = vmul.f32 %v67, 0.6931472
    %v69 = vmax.f32 %v66, -100.0
    %v70 = vmax.f32 %v68, -100.0
    %v71 = vsub.f32 1.0, %v61
    %v72 = vsub.f32 1.0, %v62
    %v73 = vlog2.pop %v71
    %v74 = vmul.f32 %v73, 0.6931472
    %v75 = vlog2.pop %v72
    %v76 = vmul.f32 %v75, 0.6931472
    %v77 = vmax.f32 %v74, -100.0
    %v78 = vmax.f32 %v76, -100.0
    %v79 = vmul.f32 %v63, %v69
    %v80 = vmul.f32 %v64, %v70
    %v81 = vsub.f32 1.0, %v63
    %v82 = vsub.f32 1.0, %v64
    %v83 = vmul.f32 %v81, %v77
    %v84 = vmul.f32 %v82, %v78
    %v85 = vadd.f32 %v79, %v83
    %v86 = vadd.f32 %v80, %v84
    %v87 = vsub.f32 0.0, %v85
    %v88 = vsub.f32 0.0, %v86
    %v89 = vsub.f32 0.0, %v87
    %v90 = vsub.f32 0.0, %v88
    %v91 = vmul.f32 %v89, 1.442695
    %v92 = vpow.pop %v91
    %v93 = vmul.f32 %v90, 1.442695
    %v94 = vpow.pop %v93
    %v95 = vsub.f32 1.0, %v92
    %v96 = vsub.f32 1.0, %v94
    %v97 = vmul.f32 %v95, %v95
    %v98 = vmul.f32 %v96, %v96
    %v99 = vmul.f32 %v97, %v97
    %v100 = vmul.f32 %v98, %v98
    %v101 = vmul.f32 %v99, 0.5
    %v102 = vmul.f32 %v100, 0.5
    %v103 = vmul.f32 %v101, %v87
    %v104 = vmul.f32 %v102, %v88
    %v105 = vld [vmem:[#allocation2] sm:$0xff]
    %v106 = vadd.f32 %v103, %v104
    %v107 = vadd.f32 %v105, %v106
    %108 = vst [vmem:[#allocation2] sm:$0xff] %v107
    // Predicated region
    $region22: #{tpu_custom_call.1} parent=1 // pred_check
      %p109 = pneg %p56
    $region23: #{tpu_custom_call.1} parent=1 // pred_check_branch
      %111 = sbr.rel (%p109) target = $region25
    $region24: #{tpu_custom_call.1} parent=1 // pred_region
      %v112 = vld [vmem:[#allocation2] sm:$0xff]
      %113 = vst [vmem:[#allocation8] sm:$0xff] %v112
    $region25: #{tpu_custom_call.1} parent=1 // pred_fallthru
      _
    // Predicated region
    $region26: #{tpu_custom_call.1} parent=1 // pred_check
      _
    $region27: #{tpu_custom_call.1} parent=1 // pred_check_branch
      %115 = sbr.rel (0) target = $region29
    $region28: #{tpu_custom_call.1} parent=1 // pred_region
      %117 = vsyncadd [#allocation5], 0
      %s119 = sshll.u32 [#allocation8], 4
      %s120 = int_to_ptr.vmem [resolvable:$true] %s119
      %s121 = sshll.u32 %s2, 4
      %s122 = int_to_ptr.hbm [resolvable:$true] %s121
      %124 = dma.vmem_to_hbm [thread:$0]  %s120, 128, %s122, [#allocation5]
    $region29: #{tpu_custom_call.1} parent=1 // pred_fallthru
      _
    // Predicated region
    $region30: #{tpu_custom_call.1} parent=1 // pred_check
      _
    $region31: #{tpu_custom_call.1} parent=1 // pred_check_branch
      %126 = sbr.rel (0) target = $region33
    $region32: #{tpu_custom_call.1} parent=1 // pred_region
      %128 = dma.done [#allocation5], 128
    $region33: #{tpu_custom_call.1} parent=1 // pred_fallthru
      _
    %129 = vsyncpa [#allocation4], 1
    %130 = vsyncpa [#allocation7], 1
    %131 = vsyncpa [#allocation5], 1

</llo_original>
